<compile_context>
chip_gen: v7x
topology: tpu7x:2x2x1
jax: 0.10.0
libtpu: 0.0.40
codegen_flags: <defaults>
</compile_context>

<pallas_src>
import functools

import jax
import jax.numpy as jnp
from jax import lax
from jax.experimental import pallas as pl
from jax.experimental.pallas import tpu as pltpu


def _vmem_capacity_bytes() -> int:
    """Physical VMEM per TensorCore; conservative fallback if the query is unavailable."""
    try:
        info = pltpu.get_tpu_info()
        cap = getattr(info, "vmem_capacity_bytes", None)
        if cap:
            return int(cap)
    except Exception:
        pass
    return 64 << 20  # v7x per-TensorCore VMEM (most restrictive generation)


def _prompt_cls_kernel(pos_ref, h_ref, wf_ref, bf_ref, lw_ref, sm_ref, hrow_sc,
                       *, block_b: int, seq_len: int, chunk_rows: int, compute_dtype):
    """One grid step handles `block_b` batch rows (a (block_b*S, H) hidden slab).

    pos_ref : (B,) int32 SMEM      <mask> position of every sequence (scalar prefetch)
    h_ref   : (block_b*S, H) f32   hidden-state slab (bf16 cast, if any, happens HERE)
    wf_ref  : (H, Cp)              fused LM-head @ verbalizer weight (Cp = C padded to 128 lanes)
    bf_ref  : (1, Cp) f32          fused bias; padded lanes hold -1e30 so softmax ignores them
    lw_ref  : (1, block_b, Cp) f32 label_words_logits block (dense (block_b, Cp) store)
    sm_ref  : (block_b*S, Cp)      per-token class softmax
    hrow_sc : (block_b, H) f32     scratch: gathered <mask> hidden rows
    """
    i = pl.program_id(0)
    rows = block_b * seq_len

    # ---- label_words_logits: gather each sequence's <mask> hidden row, one small matmul ----
    # (exactly-one-mask-per-row contract; a row with no mask would read position 0)
    def gather_row(b, carry):
        pos = pos_ref[i * block_b + b]
        hrow_sc[pl.ds(b, 1), :] = h_ref[pl.ds(b * seq_len + pos, 1), :]
        return carry

    lax.fori_loop(0, block_b, gather_row, 0)

    lw = jnp.dot(hrow_sc[...].astype(compute_dtype), wf_ref[...],
                 preferred_element_type=jnp.float32) + bf_ref[...]        # (block_b, Cp) f32
    lw_ref[...] = lw[None].astype(lw_ref.dtype)

    # ---- per-token class logits + softmax, chunked over rows to bound live vregs ----
    n_chunks = rows // chunk_rows

    def do_chunk(c, carry):
        r0 = pl.multiple_of(c * chunk_rows, chunk_rows)
        hs = h_ref[pl.ds(r0, chunk_rows), :].astype(compute_dtype)
        tok = jnp.dot(hs, wf_ref[...],
                      preferred_element_type=jnp.float32) + bf_ref[...]   # (chunk, Cp) f32
        m = jnp.max(tok, axis=-1, keepdims=True)
        e = jnp.exp(tok - m)                                              # padded lanes -> 0
        sm = e / jnp.sum(e, axis=-1, keepdims=True)                       # exact normalization
        sm_ref[pl.ds(r0, chunk_rows), :] = sm.astype(sm_ref.dtype)
        return carry

    lax.fori_loop(0, n_chunks, do_chunk, 0)


def fuse_head_and_verbalizer(w_lm, b_lm, m_verb, *, compute_dtype=jnp.float32):
    """Fold the LM head into the verbalizer ONCE (call at init / cache keyed on weight identity).

    (h @ W_lm + b) @ M_verb == h @ (W_lm @ M_verb) + (b @ M_verb): the forward path never
    touches the vocab dimension, and this O(H*V*C) matmul is not re-run per call.
    """
    H, V = w_lm.shape
    Vv, C = m_verb.shape
    assert Vv == V and b_lm.shape == (V,)
    Cp = ((C + 127) // 128) * 128                                         # lane-dense class dim

    w_fused = w_lm.astype(jnp.float32) @ m_verb.astype(jnp.float32)       # (H, C)
    b_fused = b_lm.astype(jnp.float32) @ m_verb.astype(jnp.float32)       # (C,)
    w_f = jnp.zeros((H, Cp), jnp.float32).at[:, :C].set(w_fused).astype(compute_dtype)
    b_f = jnp.full((1, Cp), -1e30, jnp.float32).at[0, :C].set(b_fused)    # bias kept f32
    return w_f, b_f, C


def prompt_for_classification(hidden, loss_ids, w_f, b_f, num_classes, *,
                              block_b=None, softmax_dtype=jnp.float32, trim_outputs=True):
    """hidden: (B,S,H) f32, loss_ids: (B,S) int32 (one 1 per row),
       w_f/b_f: fused weights from fuse_head_and_verbalizer (w_f dtype = MXU operand dtype)."""
    B, S, H = hidden.shape
    Hp, Cp = w_f.shape
    assert Hp == H and b_f.shape == (1, Cp)
    assert S % 8 == 0, "sequence length must be a multiple of 8 (sublane tiling)"
    C = num_classes
    compute_dtype = w_f.dtype

    # <mask> position per sequence (exactly one loss_id > 0 per row by contract).
    mask_pos = jnp.argmax(loss_ids > 0, axis=1).astype(jnp.int32)         # (B,)

    # --- generation-aware block sizing from the VMEM budget (v7x 64 MiB vs v5e/v6e 128 MiB) ---
    cap = _vmem_capacity_bytes()
    budget = int(cap * 0.75)
    wbytes = jnp.dtype(compute_dtype).itemsize
    smbytes = jnp.dtype(softmax_dtype).itemsize

    def footprint(bb):
        rows = bb * S
        return (2 * rows * H * 4                       # hidden block (f32, double-buffered)
                + 2 * rows * Cp * smbytes              # softmax block (double-buffered)
                + 2 * bb * Cp * 4                      # lw block
                + 2 * H * Cp * wbytes + 2 * Cp * 4     # fused weight / bias
                + bb * H * 4                           # mask-row scratch
                + 4 * min(rows, 512) * Cp * 4)         # in-flight chunk intermediates

    if block_b is None:
        max_bb = B // 2 if B >= 2 else 1               # keep grid >= 2: both v7x TCs get work
        block_b = 1
        for d in range(1, max_bb + 1):
            if B % d == 0 and d * S <= 4096 and footprint(d) <= budget:
                block_b = d
    assert B % block_b == 0
    rows = block_b * S
    grid = B // block_b

    # Inner chunk size for the matmul+softmax loop (bounds live vregs at large rows).
    chunk_rows = max(d for d in range(1, rows + 1) if rows % d == 0 and d <= 512)

    # No astype here: hidden stays f32 in HBM, the bf16 cast (if any) happens in-kernel.
    h2d = hidden.reshape(B * S, H)

    vmem_limit = int(min(cap, max(footprint(block_b) + (4 << 20), 32 << 20)))

    lw, sm = pl.pallas_call(
        functools.partial(_prompt_cls_kernel, block_b=block_b, seq_len=S,
                          chunk_rows=chunk_rows, compute_dtype=compute_dtype),
        out_shape=(
            jax.ShapeDtypeStruct((grid, block_b, Cp), jnp.float32),
            jax.ShapeDtypeStruct((B * S, Cp), softmax_dtype),
        ),
        grid_spec=pltpu.PrefetchScalarGridSpec(
            num_scalar_prefetch=1,
            grid=(grid,),
            in_specs=[
                pl.BlockSpec((rows, H), lambda i, pos: (i, 0)),
                pl.BlockSpec((H, Cp), lambda i, pos: (0, 0)),
                pl.BlockSpec((1, Cp), lambda i, pos: (0, 0)),
            ],
            out_specs=[
                pl.BlockSpec((1, block_b, Cp), lambda i, pos: (i, 0, 0)),
                pl.BlockSpec((rows, Cp), lambda i, pos: (i, 0)),
            ],
            scratch_shapes=[pltpu.VMEM((block_b, H), jnp.float32)],
        ),
        compiler_params=pltpu.CompilerParams(
            dimension_semantics=("parallel",),
            vmem_limit_bytes=vmem_limit),
    )(mask_pos, h2d, w_f, b_f)

    label_words_logits = lw.reshape(B, Cp)                     # free contiguous reshape
    all_token_softmax = sm.reshape(B, S, Cp)
    if trim_outputs:
        # Module-faithful shapes. Pass trim_outputs=False to skip this extra XLA slice pass
        # and let the consumer read the padded (.., Cp) arrays directly (padded lanes are 0
        # in the softmax and ~-1e30 in the label-word logits).
        label_words_logits = label_words_logits[:, :C]
        all_token_softmax = all_token_softmax[:, :, :C]
    return label_words_logits, all_token_softmax


def reference(hidden, loss_ids, w_lm, b_lm, m_verb):
    """Pure-JAX reference mirroring the PyTorch forward (unfused, f32)."""
    B, S, H = hidden.shape
    logits = jnp.einsum("bsh,hv->bsv", hidden, w_lm) + b_lm              # (B,S,V)
    mask = (loss_ids > 0).astype(jnp.float32)[..., None]
    at_mask = jnp.sum(logits * mask, axis=1)                             # (B,V)
    label_words_logits = at_mask @ m_verb                                # (B,C)
    all_token_logits = (logits.reshape(B * S, -1) @ m_verb).reshape(B, S, -1)
    all_token_softmax = jax.nn.softmax(all_token_logits, axis=-1)
    return label_words_logits, all_token_softmax


if __name__ == "__main__":
    # Small shapes consistent with the module's forward.
    B, S, H, V, C = 2, 8, 32, 128, 4
    WORDS_PER_CLASS = 2

    key = jax.random.PRNGKey(0)
    k_emb, k_ids, k_w, k_b = jax.random.split(key, 4)

    # Synthetic PLM parameters (deterministic).
    embedding = jax.random.normal(k_emb, (V, H), dtype=jnp.float32) * 0.1
    w_lm = jax.random.normal(k_w, (H, V), dtype=jnp.float32) * 0.1
    b_lm = jax.random.normal(k_b, (V,), dtype=jnp.float32) * 0.01

    # Synthetic verbalizer: class c -> label words {2c, 2c+1}; average their logits.
    m_verb = jnp.zeros((V, C), dtype=jnp.float32)
    for c in range(C):
        for w in range(WORDS_PER_CLASS):
            m_verb = m_verb.at[c * WORDS_PER_CLASS + w, c].set(1.0 / WORDS_PER_CLASS)

    # Synthetic wrapped batch: input_ids + loss_ids (one <mask> per sequence).
    input_ids = jax.random.randint(k_ids, (B, S), 0, V, dtype=jnp.int32)
    loss_ids = jnp.zeros((B, S), dtype=jnp.int32)
    loss_ids = loss_ids.at[0, 3].set(1)
    loss_ids = loss_ids.at[1, 5].set(1)

    # PLM "body" (embedding lookup) is glue; the hot path (fused head+verbalizer matmul,
    # mask-row gather, softmax) lives in the Pallas kernel.
    hidden = embedding[input_ids]                                        # (B, S, H)

    lw_ref_out, sm_ref_out = reference(hidden, loss_ids, w_lm, b_lm, m_verb)

    # ---- f32 operand path: fuse once (init-time), call the forward twice (no re-fusion). ----
    w_f32, b_f32, _ = fuse_head_and_verbalizer(w_lm, b_lm, m_verb, compute_dtype=jnp.float32)
    lw, sm = prompt_for_classification(hidden, loss_ids, w_f32, b_f32, C)
    lw, sm = prompt_for_classification(hidden, loss_ids, w_f32, b_f32, C)   # steady-state call
    jax.block_until_ready((lw, sm))
    assert lw.shape == (B, C) and sm.shape == (B, S, C)
    assert jnp.allclose(lw, lw_ref_out, atol=1e-4, rtol=1e-4)
    assert jnp.allclose(sm, sm_ref_out, atol=1e-4, rtol=1e-4)            # exact softmax divide

    # ---- bf16 operand path (2x MXU throughput, half weight footprint), f32 accumulation.
    #      The hidden slab stays f32 in HBM; the cast to bf16 happens inside the kernel. ----
    w_f16, b_f16, _ = fuse_head_and_verbalizer(w_lm, b_lm, m_verb, compute_dtype=jnp.bfloat16)
    lw16, sm16 = prompt_for_classification(hidden, loss_ids, w_f16, b_f16, C)
    jax.block_until_ready((lw16, sm16))
    assert jnp.allclose(lw16, lw_ref_out, atol=1e-2, rtol=1e-2)
    assert jnp.allclose(sm16, sm_ref_out, atol=2e-2, rtol=2e-2)

    # TODO(synk): abstract Verbalizer.process_outputs variants (log-softmax calibration,
    # multi-token label words) are not modeled; synthetic verbalizer = gather + mean.
    print("KERNEL_OK")
</pallas_src>

<mosaic_0001>
module attributes {stable_mosaic.version = 11 : i64} {
  func.func @_prompt_cls_kernel(%arg0: i32, %arg1: memref<2xi32, #tpu.memory_space<smem>>, %arg2: memref<8x32xf32, #tpu.memory_space<vmem>>, %arg3: memref<32x128xf32, #tpu.memory_space<vmem>>, %arg4: memref<1x128xf32, #tpu.memory_space<vmem>>, %arg5: memref<1x1x128xf32, #tpu.memory_space<vmem>>, %arg6: memref<8x128xf32, #tpu.memory_space<vmem>>, %arg7: memref<1x32xf32, #tpu.memory_space<vmem>>) attributes {dimension_semantics = [#tpu.dimension_semantics<parallel>], iteration_bounds = array<i64: 2>, scalar_prefetch = 1 : i64, scratch_operands = 1 : i64, tpu.core_type = #tpu.core_type<tc>, window_params = [{transform_indices = @transform_0, window_bounds = array<i64: 8, 32>}, {pipeline_mode = #tpu.pipeline_mode<synchronous>, transform_indices = @transform_1, window_bounds = array<i64: 32, 128>}, {pipeline_mode = #tpu.pipeline_mode<synchronous>, transform_indices = @transform_2, window_bounds = array<i64: 1, 128>}, {transform_indices = @transform_3, window_bounds = array<i64: 1, 1, 128>}, {transform_indices = @transform_4, window_bounds = array<i64: 8, 128>}]} {
    %c0_i32 = arith.constant 0 : i32
    %c1_i32 = arith.constant 1 : i32
    %0 = arith.muli %arg0, %c1_i32 : i32
    %1 = arith.addi %0, %c0_i32 : i32
    %2 = arith.index_cast %1 : i32 to index
    %3 = memref.load %arg1[%2] : memref<2xi32, #tpu.memory_space<smem>>
    %c8_i32 = arith.constant 8 : i32
    %4 = arith.muli %c0_i32, %c8_i32 : i32
    %5 = arith.addi %4, %3 : i32
    %6 = arith.index_cast %5 : i32 to index
    %c0 = arith.constant 0 : index
    %7 = vector.load %arg2[%6, %c0] : memref<8x32xf32, #tpu.memory_space<vmem>>, vector<1x32xf32>
    %8 = arith.index_cast %c0_i32 : i32 to index
    %c0_0 = arith.constant 0 : index
    %9 = vector.load %arg7[%8, %c0_0] : memref<1x32xf32, #tpu.memory_space<vmem>>, vector<1x32xf32>
    tpu.vector_store %arg7[%8, %c0_0], %7 {strides = array<i32>} : memref<1x32xf32, #tpu.memory_space<vmem>>, vector<1x32xf32>,
    %c1_i32_1 = arith.constant 1 : i32
    %c0_2 = arith.constant 0 : index
    %c0_3 = arith.constant 0 : index
    %10 = vector.load %arg7[%c0_2, %c0_3] : memref<1x32xf32, #tpu.memory_space<vmem>>, vector<1x32xf32>
    %c0_4 = arith.constant 0 : index
    %c0_5 = arith.constant 0 : index
    %11 = vector.load %arg3[%c0_4, %c0_5] : memref<32x128xf32, #tpu.memory_space<vmem>>, vector<32x128xf32>
    %cst = arith.constant dense<0.000000e+00> : vector<1x128xf32>
    %12 = tpu.matmul %10, %11, %cst {dimension_numbers = #tpu.dot_dimension_numbers<[1], [0], [0], [1], [0, 0, 1, 1], [], []>} : vector<1x32xf32>, vector<32x128xf32>, vector<1x128xf32> -> vector<1x128xf32>
    %c0_6 = arith.constant 0 : index
    %c0_7 = arith.constant 0 : index
    %13 = vector.load %arg4[%c0_6, %c0_7] : memref<1x128xf32, #tpu.memory_space<vmem>>, vector<1x128xf32>
    %14 = arith.addf %12, %13 : vector<1x128xf32>
    %15 = vector.shape_cast %14 : vector<1x128xf32> to vector<1x1x128xf32>
    %c0_8 = arith.constant 0 : index
    %c0_9 = arith.constant 0 : index
    %c0_10 = arith.constant 0 : index
    %16 = vector.load %arg5[%c0_8, %c0_9, %c0_10] : memref<1x1x128xf32, #tpu.memory_space<vmem>>, vector<1x1x128xf32>
    tpu.vector_store %arg5[%c0_8, %c0_9, %c0_10], %15 {strides = array<i32>} : memref<1x1x128xf32, #tpu.memory_space<vmem>>, vector<1x1x128xf32>,
    %c0_i32_11 = arith.constant 0 : i32
    %c8_i32_12 = arith.constant 8 : i32
    %17 = arith.muli %c0_i32_11, %c8_i32_12 : i32
    %18 = tpu.assume_multiple %17, 8 : i32
    %19 = arith.index_cast %18 : i32 to index
    %c0_13 = arith.constant 0 : index
    %20 = vector.load %arg2[%19, %c0_13] : memref<8x32xf32, #tpu.memory_space<vmem>>, vector<8x32xf32>
    %c0_14 = arith.constant 0 : index
    %c0_15 = arith.constant 0 : index
    %21 = vector.load %arg3[%c0_14, %c0_15] : memref<32x128xf32, #tpu.memory_space<vmem>>, vector<32x128xf32>
    %cst_16 = arith.constant dense<0.000000e+00> : vector<8x128xf32>
    %22 = tpu.matmul %20, %21, %cst_16 {dimension_numbers = #tpu.dot_dimension_numbers<[1], [0], [0], [1], [0, 0, 1, 1], [], []>} : vector<8x32xf32>, vector<32x128xf32>, vector<8x128xf32> -> vector<8x128xf32>
    %c0_17 = arith.constant 0 : index
    %c0_18 = arith.constant 0 : index
    %23 = vector.load %arg4[%c0_17, %c0_18] : memref<1x128xf32, #tpu.memory_space<vmem>>, vector<1x128xf32>
    %24 = vector.broadcast %23 : vector<1x128xf32> to vector<8x128xf32>
    %25 = arith.addf %22, %24 : vector<8x128xf32>
    %cst_19 = arith.constant dense<0xFF800000> : vector<8xf32>
    %26 = vector.multi_reduction <maximumf>, %25, %cst_19 [1] : vector<8x128xf32> to vector<8xf32>
    %27 = vector.shape_cast %26 : vector<8xf32> to vector<8x1xf32>
    %28 = vector.broadcast %27 : vector<8x1xf32> to vector<8x128xf32>
    %29 = arith.subf %25, %28 : vector<8x128xf32>
    %30 = math.exp %29 : vector<8x128xf32>
    %cst_20 = arith.constant dense<0.000000e+00> : vector<8xf32>
    %31 = vector.multi_reduction <add>, %30, %cst_20 [1] : vector<8x128xf32> to vector<8xf32>
    %32 = vector.shape_cast %31 : vector<8xf32> to vector<8x1xf32>
    %33 = vector.broadcast %32 : vector<8x1xf32> to vector<8x128xf32>
    %34 = arith.divf %30, %33 : vector<8x128xf32>
    %35 = arith.index_cast %18 : i32 to index
    %c0_21 = arith.constant 0 : index
    %36 = vector.load %arg6[%35, %c0_21] : memref<8x128xf32, #tpu.memory_space<vmem>>, vector<8x128xf32>
    tpu.vector_store %arg6[%35, %c0_21], %34 {strides = array<i32>} : memref<8x128xf32, #tpu.memory_space<vmem>>, vector<8x128xf32>,
    %c1_i32_22 = arith.constant 1 : i32
    return
  }
  func.func @transform_0(%arg0: i32, %arg1: memref<2xi32, #tpu.memory_space<smem>>) -> (i32, i32) {
    %c0_i32 = arith.constant 0 : i32
    %c0_i32_0 = arith.constant 0 : i32
    return %arg0, %c0_i32 : i32, i32
  }
  func.func @transform_1(%arg0: i32, %arg1: memref<2xi32, #tpu.memory_space<smem>>) -> (i32, i32) {
    %c0_i32 = arith.constant 0 : i32
    %c0_i32_0 = arith.constant 0 : i32
    %c0_i32_1 = arith.constant 0 : i32
    return %c0_i32, %c0_i32_0 : i32, i32
  }
  func.func @transform_2(%arg0: i32, %arg1: memref<2xi32, #tpu.memory_space<smem>>) -> (i32, i32) {
    %c0_i32 = arith.constant 0 : i32
    %c0_i32_0 = arith.constant 0 : i32
    %c0_i32_1 = arith.constant 0 : i32
    return %c0_i32, %c0_i32_0 : i32, i32
  }
  func.func @transform_3(%arg0: i32, %arg1: memref<2xi32, #tpu.memory_space<smem>>) -> (i32, i32, i32) {
    %c0_i32 = arith.constant 0 : i32
    %c0_i32_0 = arith.constant 0 : i32
    %c0_i32_1 = arith.constant 0 : i32
    return %arg0, %c0_i32, %c0_i32_0 : i32, i32, i32
  }
  func.func @transform_4(%arg0: i32, %arg1: memref<2xi32, #tpu.memory_space<smem>>) -> (i32, i32) {
    %c0_i32 = arith.constant 0 : i32
    %c0_i32_0 = arith.constant 0 : i32
    return %arg0, %c0_i32 : i32, i32
  }
}

</mosaic_0001>

<llo_original>
// kernel: tpu_custom_call.1
$region0: #{tpu_custom_call.1}
  #allocation0 [shape = 'u32[]', space=smem, size = 0x4, offset = 0x4, fixed_abs, tag = 'smem constant byte address 0x4 - core index']
  #allocation1 [shape = 'u32[144,128]{1,0:T(1,128)}', space=vmem, size = 0x12000, scoped, tag = 'internal scratch']
  #allocation2 [shape = 'f32[1,32]{1,0:T(1,128)}', space=vmem, size = 0x200, scoped, tag = 'scratch operand']
  #allocation3 [shape = 's32[1]{0}', space=sflag, size = 0x4, scoped, tag = 'scoped memory for tpu_custom_call.1']
  #allocation4 [shape = 'u8[512]{0}', space=smem, size = 0x200, scoped, tag = 'prefetched SMEM operand 0']
  %s0 = inlined_call_operand.hbm [shape: s32[2], index: 0, kind: input, shape index: {}]
  %s1 = inlined_call_operand.hbm [shape: f32[16,32], index: 1, kind: input, shape index: {}]
  %s2 = inlined_call_operand.hbm [shape: f32[32,128], index: 2, kind: input, shape index: {}]
  %s3 = inlined_call_operand.vmem [shape: f32[1,128], index: 3, kind: input, shape index: {}]
  %s4 = inlined_call_operand.hbm [shape: f32[2,1,128], index: 4, kind: output, shape index: {0}]
  %s5 = inlined_call_operand.hbm [shape: f32[16,128], index: 5, kind: output, shape index: {1}]
  %6 = xla_tuple %s4, %s5
  %s7 = sld [smem:[#allocation0]]
  $region61: #{tpu_custom_call.1} parent=0
    _
  %s9 = ssub.s32 1, %s7
  %s10 = scalar_select 0, %s9, %s7
  %12 = dma.hbm_to_smem %s0, 16, [#allocation4], [#allocation3]
  %13 = dma.done [#allocation3], 16
  %14 = sfence
  $region1: #{tpu_custom_call.1} parent=0
    #allocation5 [shape = 'u8[8192]{0}', space=vmem, size = 0x2000, scoped, tag = 'input window, operand 1']
    #allocation6 [shape = 's32[2]{0}', space=sflag, size = 0x8, scoped, tag = 'scoped memory for tpu_custom_call.1']
    #allocation7 [shape = 's32[2]{0}', space=sflag, size = 0x8, scoped, tag = 'scoped memory for tpu_custom_call.1']
    #allocation8 [shape = 'u8[16384]{0}', space=vmem, size = 0x4000, scoped, tag = 'input window, operand 2, single buffered']
    #allocation9 [shape = 's32[1]{0}', space=sflag, size = 0x4, scoped, tag = 'scoped memory for tpu_custom_call.1']
    #allocation10 [shape = 'u8[1024]{0}', space=vmem, size = 0x400, scoped, tag = 'output window, operand 0']
    #allocation11 [shape = 'u8[8192]{0}', space=vmem, size = 0x2000, scoped, tag = 'output window, operand 1']
    #allocation12 [shape = 's32[2]{0}', space=sflag, size = 0x8, scoped, tag = 'scoped memory for tpu_custom_call.1']
    %15 = vsyncpa [#allocation6], 0
    %s16 = scalar_lea.sflag [#allocation6], 1
    %17 = vsyncpa %s16, 0
    %18 = vsyncpa [#allocation9], 0
    %19 = vsyncpa [#allocation7], 0
    %s20 = scalar_lea.sflag [#allocation7], 1
    %21 = vsyncpa %s20, 0
    %22 = vsyncpa [#allocation12], 0
    %s23 = scalar_lea.sflag [#allocation12], 1
    %24 = vsyncpa %s23, 0
    loop: start=0, step=1, limit=4
    $region2: #{tpu_custom_call.1} parent=1 // loop_pre_header
      _
    $region3: #{tpu_custom_call.1} parent=1 // loop_header
      %s26 = sphi 0, %s30
      %p27 = scmp.ge.s32.totalorder %s26, 4
      %s36 = sphi 0, %s38
      %s39 = sphi 0, %s36
      %s40 = sphi 0, %s39
      %s56 = sphi 0, %s40
      %s60 = sphi 0, %s60
      %s62 = sphi 0, %s60
      %s63 = sphi 0, %s62
      %s77 = sphi 0, %s63
      %s81 = sphi 0, %s81
      %s83 = sphi 0, %s81
      %s84 = sphi 0, %s83
      %s98 = sphi 0, %s84
      %s104 = sphi 0, %s106
      %s107 = sphi 0, %s104
      %s108 = sphi 0, %s107
      %s124 = sphi 0, %s108
      %s130 = sphi 0, %s132
      %s133 = sphi 0, %s130
      %s134 = sphi 0, %s133
      %s150 = sphi 0, %s134
    $region4: #{tpu_custom_call.1} parent=1 // loop_header_branch
      %29 = sbr.rel (%p27) target = $region8
    $region5: #{tpu_custom_call.1} parent=1 // loop_body
      %s31 = ssub.s32 %s26, 1
      %s32 = ssub.s32 %s26, 2
      %s33 = sadd.s32 %s26, 1
      %s34 = ssub.s32 %s26, %s33
      %p35 = scmp.eq.s32.totalorder %s34, 0
      %s37 = sadd.s32 %s36, 1
      %s38 = scalar_select %p35, %s36, %s37
      %p41 = pneg %p35
      %p42 = scmp.eq.s32.totalorder %s26, 1
      %p43 = por %p41, %p42
      %p44 = scmp.ne.s32.totalorder %s36, %s39
      %p45 = scmp.eq.s32.totalorder %s26, 0
      %p46 = por %p44, %p45
      %p47 = scmp.ne.s32.totalorder %s36, %s39
      %p48 = scmp.eq.s32.totalorder %s31, 1
      %p49 = por %p47, %p48
      %p50 = scmp.ne.s32.totalorder %s39, %s40
      %p51 = scmp.eq.s32.totalorder %s31, 0
      %p52 = por %p50, %p51
      %p53 = scmp.ne.s32.totalorder %s39, %s40
      %p54 = scmp.eq.s32.totalorder %s32, 1
      %p55 = por %p53, %p54
      %p57 = scmp.ne.s32.totalorder %s40, %s56
      %p58 = scmp.eq.s32.totalorder %s32, 0
      %p59 = por %p57, %p58
      %s61 = sadd.s32 %s60, 1
      %p64 = scmp.eq.s32.totalorder %s26, 1
      %p65 = scmp.ne.s32.totalorder %s60, %s62
      %p66 = scmp.eq.s32.totalorder %s26, 0
      %p67 = por %p65, %p66
      %p68 = scmp.ne.s32.totalorder %s60, %s62
      %p69 = scmp.eq.s32.totalorder %s31, 1
      %p70 = por %p68, %p69
      %p71 = scmp.ne.s32.totalorder %s62, %s63
      %p72 = scmp.eq.s32.totalorder %s31, 0
      %p73 = por %p71, %p72
      %p74 = scmp.ne.s32.totalorder %s62, %s63
      %p75 = scmp.eq.s32.totalorder %s32, 1
      %p76 = por %p74, %p75
      %p78 = scmp.ne.s32.totalorder %s63, %s77
      %p79 = scmp.eq.s32.totalorder %s32, 0
      %p80 = por %p78, %p79
      %s82 = sadd.s32 %s81, 1
      %p85 = scmp.eq.s32.totalorder %s26, 1
      %p86 = scmp.ne.s32.totalorder %s81, %s83
      %p87 = scmp.eq.s32.totalorder %s26, 0
      %p88 = por %p86, %p87
      %p89 = scmp.ne.s32.totalorder %s81, %s83
      %p90 = scmp.eq.s32.totalorder %s31, 1
      %p91 = por %p89, %p90
      %p92 = scmp.ne.s32.totalorder %s83, %s84
      %p93 = scmp.eq.s32.totalorder %s31, 0
      %p94 = por %p92, %p93
      %p95 = scmp.ne.s32.totalorder %s83, %s84
      %p96 = scmp.eq.s32.totalorder %s32, 1
      %p97 = por %p95, %p96
      %p99 = scmp.ne.s32.totalorder %s84, %s98
      %p100 = scmp.eq.s32.totalorder %s32, 0
      %p101 = por %p99, %p100
      %s102 = ssub.s32 %s26, %s33
      %p103 = scmp.eq.s32.totalorder %s102, 0
      %s105 = sadd.s32 %s104, 1
      %s106 = scalar_select %p103, %s104, %s105
      %p109 = pneg %p103
      %p110 = scmp.eq.s32.totalorder %s26, 1
      %p111 = por %p109, %p110
      %p112 = scmp.ne.s32.totalorder %s104, %s107
      %p113 = scmp.eq.s32.totalorder %s26, 0
      %p114 = por %p112, %p113
      %p115 = scmp.ne.s32.totalorder %s104, %s107
      %p116 = scmp.eq.s32.totalorder %s31, 1
      %p117 = por %p115, %p116
      %p118 = scmp.ne.s32.totalorder %s107, %s108
      %p119 = scmp.eq.s32.totalorder %s31, 0
      %p120 = por %p118, %p119
      %p121 = scmp.ne.s32.totalorder %s107, %s108
      %p122 = scmp.eq.s32.totalorder %s32, 1
      %p123 = por %p121, %p122
      %p125 = scmp.ne.s32.totalorder %s108, %s124
      %p126 = scmp.eq.s32.totalorder %s32, 0
      %p127 = por %p125, %p126
      %s128 = ssub.s32 %s26, %s33
      %p129 = scmp.eq.s32.totalorder %s128, 0
      %s131 = sadd.s32 %s130, 1
      %s132 = scalar_select %p129, %s130, %s131
      %p135 = pneg %p129
      %p136 = scmp.eq.s32.totalorder %s26, 1
      %p137 = por %p135, %p136
      %p138 = scmp.ne.s32.totalorder %s130, %s133
      %p139 = scmp.eq.s32.totalorder %s26, 0
      %p140 = por %p138, %p139
      %p141 = scmp.ne.s32.totalorder %s130, %s133
      %p142 = scmp.eq.s32.totalorder %s31, 1
      %p143 = por %p141, %p142
      %p144 = scmp.ne.s32.totalorder %s133, %s134
      %p145 = scmp.eq.s32.totalorder %s31, 0
      %p146 = por %p144, %p145
      %p147 = scmp.ne.s32.totalorder %s133, %s134
      %p148 = scmp.eq.s32.totalorder %s32, 1
      %p149 = por %p147, %p148
      %p151 = scmp.ne.s32.totalorder %s134, %s150
      %p152 = scmp.eq.s32.totalorder %s32, 0
      %p153 = por %p151, %p152
      %p154 = scmp.le.s32.totalorder 1, %s26
      %p155 = scmp.lt.s32.totalorder %s26, 3
      %p156 = pnand %p154, %p155
      %p157 = pneg %p156
      // Predicated region
      $region9: #{tpu_custom_call.1} parent=5 // pred_check
        _
      $region10: #{tpu_custom_call.1} parent=5 // pred_check_branch
        %159 = sbr.rel (%p156) target = $region12
      $region11: #{tpu_custom_call.1} parent=5 // pred_region
        %s160 = ssub.s32 %s26, 1
        // Predicated region
        $region13: #{tpu_custom_call.1} parent=11 // pred_check
          %p161 = pneg %p73
        $region14: #{tpu_custom_call.1} parent=11 // pred_check_branch
          %163 = sbr.rel (%p161) target = $region16
        $region15: #{tpu_custom_call.1} parent=11 // pred_region
          %s165 = ssub.s32 512, 512
          %166 = vsyncadd [#allocation9], %s165
          %s167 = sshll.u32 [#allocation8], 4
          %s168 = int_to_ptr.vmem [resolvable:$true] %s167
          %173 = dma.hbm_to_vmem [thread:$0]  %s2, 512, %s168, [#allocation9], 128, 128, 8
        $region16: #{tpu_custom_call.1} parent=11 // pred_fallthru
          _
        // Predicated region
        $region17: #{tpu_custom_call.1} parent=11 // pred_check
          %p174 = pneg %p94
        $region18: #{tpu_custom_call.1} parent=11 // pred_check_branch
          %176 = sbr.rel (%p174) target = $region20
        $region19: #{tpu_custom_call.1} parent=11 // pred_region
          _
        $region20: #{tpu_custom_call.1} parent=11 // pred_fallthru
          _
      $region12: #{tpu_custom_call.1} parent=5 // pred_fallthru
        _
      %p177 = scmp.lt.s32.totalorder %s26, 2
      // Predicated region
      $region21: #{tpu_custom_call.1} parent=5 // pred_check
        %p178 = pneg %p177
      $region22: #{tpu_custom_call.1} parent=5 // pred_check_branch
        %180 = sbr.rel (%p178) target = $region24
      $region23: #{tpu_custom_call.1} parent=5 // pred_region
        // Predicated region
        $region25: #{tpu_custom_call.1} parent=23 // pred_check
          %p181 = pneg %p46
        $region26: #{tpu_custom_call.1} parent=23 // pred_check_branch
          %183 = sbr.rel (%p181) target = $region28
        $region27: #{tpu_custom_call.1} parent=23 // pred_region
          %s184 = sand.u32 %s36, 1
          %s185 = scalar_lea.sflag [#allocation6], %s184
          %s186 = sand.u32 %s36, 1
          %s187 = smul.addr %s186, 8
          %s188 = scalar_lea.vmem [#allocation5], %s187
          %s190 = ssub.s32 128, 128
          %191 = vsyncadd %s185, %s190
          %s192 = smul.addr %s26, 128
          %s193 = scalar_lea.hbm %s1, %s192
          %s195 = sshll.u32 %s188, 4
          %s196 = int_to_ptr.vmem [resolvable:$true] %s195
          %198 = dma.hbm_to_vmem [thread:$0]  %s193, 128, %s196, %s185
        $region28: #{tpu_custom_call.1} parent=23 // pred_fallthru
          _
      $region24: #{tpu_custom_call.1} parent=5 // pred_fallthru
        _
      %p199 = scmp.le.s32.totalorder 1, %s26
      %p200 = scmp.lt.s32.totalorder %s26, 3
      %p201 = pnand %p199, %p200
      %p202 = pneg %p201
      // Predicated region
      $region29: #{tpu_custom_call.1} parent=5 // pred_check
        _
      $region30: #{tpu_custom_call.1} parent=5 // pred_check_branch
        %204 = sbr.rel (%p201) target = $region32
      $region31: #{tpu_custom_call.1} parent=5 // pred_region
        %s205 = ssub.s32 %s26, 1
        %s206 = sand.u32 %s39, 1
        %s207 = scalar_lea.sflag [#allocation6], %s206
        %s208 = sand.u32 %s39, 1
        %s209 = smul.addr %s208, 8
        %s210 = scalar_lea.vmem [#allocation5], %s209
        // Predicated region
        $region33: #{tpu_custom_call.1} parent=31 // pred_check
          %p211 = pneg %p52
        $region34: #{tpu_custom_call.1} parent=31 // pred_check_branch
          %213 = sbr.rel (%p211) target = $region36
        $region35: #{tpu_custom_call.1} parent=31 // pred_region
          %214 = dma.done %s207, 128
        $region36: #{tpu_custom_call.1} parent=31 // pred_fallthru
          _
        // Predicated region
        $region37: #{tpu_custom_call.1} parent=31 // pred_check
          %p215 = pneg %p73
        $region38: #{tpu_custom_call.1} parent=31 // pred_check_branch
          %217 = sbr.rel (%p215) target = $region40
        $region39: #{tpu_custom_call.1} parent=31 // pred_region
          %218 = dma.done [#allocation9], 512
        $region40: #{tpu_custom_call.1} parent=31 // pred_fallthru
          _
        %s219 = sand.u32 %s39, 1
        %s220 = scalar_lea.sflag [#allocation6], %s219
        %s221 = sand.u32 %s39, 1
        %s222 = smul.addr %s221, 8
        %s223 = scalar_lea.vmem [#allocation5], %s222
        %p224 = pneg %p52
        %p225 = pneg %p49
        %p226 = pneg %p73
        %p227 = pneg %p70
        %p228 = pneg %p94
        %p229 = pneg %p91
        %p230 = pneg %p120
        %p231 = pneg %p117
        %s232 = sand.u32 %s107, 1
        %s233 = scalar_lea.sflag [#allocation7], %s232
        %s234 = sand.u32 %s107, 1
        %s235 = scalar_lea.vmem [#allocation10], %s234
        %p236 = pneg %p146
        %p237 = pneg %p143
        %s238 = sand.u32 %s133, 1
        %s239 = scalar_lea.sflag [#allocation12], %s238
        %s240 = sand.u32 %s133, 1
        %s241 = smul.addr %s240, 8
        %s242 = scalar_lea.vmem [#allocation11], %s241
        %s243 = sld [smem:[#allocation4 + %s31]]
        %s244 = scalar_lea.vmem %s210, %s243 [#allocation5]
        %v245 = vld [vmem:[%s244] sm:$0x1]
        %vm246 = vcmask 253952
        %247 = vst.msk [vmem:[#allocation2] sm:$0x1] %vm246, %v245
        %v248 = vld [vmem:[#allocation2] sm:$0x1]
        %v249 = vld [vmem:[#allocation8] sm:$0xff]
        %v250 = vld [vmem:[#allocation8 + $0x8] sm:$0xff]
        %v251 = vld [vmem:[#allocation8 + $0x10] sm:$0xff]
        %v252 = vld [vmem:[#allocation8 + $0x18] sm:$0xff]
        %v253 = vld [vmem:[%s3] sm:$0x1]
        %vm254 = vcmask 261120
        %v256 = vsel %vm254, %v248, 0
        %258 = vmatprep.subr.mxu0 0.0
        %259 = vmatpush1.msra.mxu0 %v249
        %260 = vmatprep.subr.mxu0 0.0
        %261 = vmatpush1.msra.mxu0 %v250
        %262 = vmatprep.subr.mxu0 0.0
        %263 = vmatpush1.msra.mxu0 %v251
        %264 = vmatprep.subr.mxu0 0.0
        %265 = vmatpush1.msra.mxu0 %v252
        %266 = vmatprep.subr.mxu0 0.0
        %267 = vmatpush1.msra.mxu0 0.0
        %268 = vmatprep.subr.mxu0 0.0
        %269 = vmatpush1.msra.mxu0 0.0
        %270 = vmatprep.subr.mxu0 0.0
        %271 = vmatpush1.msra.mxu0 0.0
        %272 = vmatprep.subr.mxu0 0.0
        %273 = vmatpush1.msra.mxu0 0.0
        %274 = vmatprep.subr.mxu0 0.0
        %275 = vmatpush1.msra.mxu0 0.0
        %276 = vmatprep.subr.mxu0 0.0
        %277 = vmatpush1.msra.mxu0 0.0
        %278 = vmatprep.subr.mxu0 0.0
        %279 = vmatpush1.msra.mxu0 0.0
        %280 = vmatprep.subr.mxu0 0.0
        %281 = vmatpush1.msra.mxu0 0.0
        %282 = vmatprep.subr.mxu0 0.0
        %283 = vmatpush1.msra.mxu0 0.0
        %284 = vmatprep.subr.mxu0 0.0
        %285 = vmatpush1.msra.mxu0 0.0
        %286 = vmatprep.subr.mxu0 0.0
        %287 = vmatpush1.msra.mxu0 0.0
        %288 = vmatprep.subr.mxu0 0.0
        %289 = vmatpush1.msra.mxu0 0.0
        %290 = vmatprep.subr.mxu0 0.0
        %291 = vmatpush1.msra.mxu0 0.0
        %292 = vmatprep.subr.mxu0 0.0
        %293 = vmatpush1.msra.mxu0 0.0
        %294 = vmatprep.subr.mxu0 0.0
        %295 = vmatpush1.msra.mxu0 0.0
        %296 = vmatprep.subr.mxu0 0.0
        %297 = vmatpush1.msra.mxu0 0.0
        %298 = vmatprep.subr.mxu0 0.0
        %299 = vmatpush1.msra.mxu0 0.0
        %300 = vmatprep.subr.mxu0 0.0
        %301 = vmatpush1.msra.mxu0 0.0
        %302 = vmatprep.subr.mxu0 0.0
        %303 = vmatpush1.msra.mxu0 0.0
        %304 = vmatprep.subr.mxu0 0.0
        %305 = vmatpush1.msra.mxu0 0.0
        %306 = vmatprep.subr.mxu0 0.0
        %307 = vmatpush1.msra.mxu0 0.0
        %308 = vmatprep.subr.mxu0 0.0
        %309 = vmatpush1.msra.mxu0 0.0
        %310 = vmatprep.subr.mxu0 0.0
        %311 = vmatpush1.msra.mxu0 0.0
        %312 = vmatprep.subr.mxu0 0.0
        %313 = vmatpush1.msra.mxu0 0.0
        %314 = vmatprep.subr.mxu0 0.0
        %315 = vmatpush1.msra.mxu0 0.0
        %316 = vmatprep.subr.mxu0 0.0
        %317 = vmatpush1.msra.mxu0 0.0
        %318 = vmatprep.subr.mxu0 0.0
        %319 = vmatpush1.msra.mxu0 0.0
        %320 = vmatprep.subr.mxu0 0.0
        %321 = vmatpush1.msra.mxu0 0.0
        %322 = vmatprep.mubr.f32.mxu0 0.0
        %323 = vmatmul.mubr.f32.gmra.mrb[0].mxu0 %v256
        %v324 = vpop.f32.mrb[0].mxu0
        %v325 = vadd.f32 %v253, %v324
        %v326 = vpop.f32.mrb[0].mxu0
        %327 = vdwg.mxu0
        %328 = vst [vmem:[%s235] sm:$0x1] %v325
        %v329 = vld [vmem:[%s210] sm:$0xff]
        %v330 = vld [vmem:[#allocation8] sm:$0xff]
        %v331 = vld [vmem:[#allocation8 + $0x8] sm:$0xff]
        %v332 = vld [vmem:[#allocation8 + $0x10] sm:$0xff]
        %v333 = vld [vmem:[#allocation8 + $0x18] sm:$0xff]
        %v334 = vld [vmem:[%s3] sm:$0x1]
        %v336 = vlaneseq
        %v337 = vshrl.u32 %v336, 7
        %v338 = vsub.s32 0, %v337
        %v339 = vrot.slane %v334, %v338
        %v342 = vsel %vm254, %v329, 0
        %344 = vmatprep.subr.mxu0 0.0
        %345 = vmatpush1.msra.mxu0 %v330
        %346 = vmatprep.subr.mxu0 0.0
        %347 = vmatpush1.msra.mxu0 %v331
        %348 = vmatprep.subr.mxu0 0.0
        %349 = vmatpush1.msra.mxu0 %v332
        %350 = vmatprep.subr.mxu0 0.0
        %351 = vmatpush1.msra.mxu0 %v333
        %352 = vmatprep.subr.mxu0 0.0
        %353 = vmatpush1.msra.mxu0 0.0
        %354 = vmatprep.subr.mxu0 0.0
        %355 = vmatpush1.msra.mxu0 0.0
        %356 = vmatprep.subr.mxu0 0.0
        %357 = vmatpush1.msra.mxu0 0.0
        %358 = vmatprep.subr.mxu0 0.0
        %359 = vmatpush1.msra.mxu0 0.0
        %360 = vmatprep.subr.mxu0 0.0
        %361 = vmatpush1.msra.mxu0 0.0
        %362 = vmatprep.subr.mxu0 0.0
        %363 = vmatpush1.msra.mxu0 0.0
        %364 = vmatprep.subr.mxu0 0.0
        %365 = vmatpush1.msra.mxu0 0.0
        %366 = vmatprep.subr.mxu0 0.0
        %367 = vmatpush1.msra.mxu0 0.0
        %368 = vmatprep.subr.mxu0 0.0
        %369 = vmatpush1.msra.mxu0 0.0
        %370 = vmatprep.subr.mxu0 0.0
        %371 = vmatpush1.msra.mxu0 0.0
        %372 = vmatprep.subr.mxu0 0.0
        %373 = vmatpush1.msra.mxu0 0.0
        %374 = vmatprep.subr.mxu0 0.0
        %375 = vmatpush1.msra.mxu0 0.0
        %376 = vmatprep.subr.mxu0 0.0
        %377 = vmatpush1.msra.mxu0 0.0
        %378 = vmatprep.subr.mxu0 0.0
        %379 = vmatpush1.msra.mxu0 0.0
        %380 = vmatprep.subr.mxu0 0.0
        %381 = vmatpush1.msra.mxu0 0.0
        %382 = vmatprep.subr.mxu0 0.0
        %383 = vmatpush1.msra.mxu0 0.0
        %384 = vmatprep.subr.mxu0 0.0
        %385 = vmatpush1.msra.mxu0 0.0
        %386 = vmatprep.subr.mxu0 0.0
        %387 = vmatpush1.msra.mxu0 0.0
        %388 = vmatprep.subr.mxu0 0.0
        %389 = vmatpush1.msra.mxu0 0.0
        %390 = vmatprep.subr.mxu0 0.0
        %391 = vmatpush1.msra.mxu0 0.0
        %392 = vmatprep.subr.mxu0 0.0
        %393 = vmatpush1.msra.mxu0 0.0
        %394 = vmatprep.subr.mxu0 0.0
        %395 = vmatpush1.msra.mxu0 0.0
        %396 = vmatprep.subr.mxu0 0.0
        %397 = vmatpush1.msra.mxu0 0.0
        %398 = vmatprep.subr.mxu0 0.0
        %399 = vmatpush1.msra.mxu0 0.0
        %400 = vmatprep.subr.mxu0 0.0
        %401 = vmatpush1.msra.mxu0 0.0
        %402 = vmatprep.subr.mxu0 0.0
        %403 = vmatpush1.msra.mxu0 0.0
        %404 = vmatprep.subr.mxu0 0.0
        %405 = vmatpush1.msra.mxu0 0.0
        %406 = vmatprep.subr.mxu0 0.0
        %407 = vmatpush1.msra.mxu0 0.0
        %408 = vmatprep.mubr.f32.mxu0 0.0
        %409 = vmatmul.mubr.f32.gmra.mrb[0].mxu0 %v342
        %v410 = vpop.f32.mrb[0].mxu0
        %v411 = vadd.f32 %v339, %v410
        %v412 = vpop.f32.mrb[0].mxu0
        %413 = vdwg.mxu0
        %414 = vmax.xlane.f32.xlu0 %v411
        %v415 = vpop.xlane.xlu0 %414
        %v416 = vsub.f32 %v411, %v415
        %v417 = vmul.f32 %v416, 1.442695
        %v418 = vpow.pop %v417
        %419 = vadd.xlane.f32.xlu0 %v418
        %v420 = vpop.xlane.xlu0 %419
        %v421 = vrcp.pop %v420
        %v422 = vmul.f32 %v418, %v421
        %423 = vst [vmem:[%s242] sm:$0xff] %v422
        %s424 = sand.u32 %s107, 1
        %s425 = scalar_lea.sflag [#allocation7], %s424
        %s426 = sand.u32 %s107, 1
        %s427 = scalar_lea.vmem [#allocation10], %s426
        %s428 = sand.u32 %s133, 1
        %s429 = scalar_lea.sflag [#allocation12], %s428
        %s430 = sand.u32 %s133, 1
        %s431 = smul.addr %s430, 8
        %s432 = scalar_lea.vmem [#allocation11], %s431
        // Predicated region
        $region41: #{tpu_custom_call.1} parent=31 // pred_check
          %p433 = pneg %p117
        $region42: #{tpu_custom_call.1} parent=31 // pred_check_branch
          %435 = sbr.rel (%p433) target = $region44
        $region43: #{tpu_custom_call.1} parent=31 // pred_region
          %s437 = ssub.s32 16, 16
          %438 = vsyncadd %s425, %s437
          %s439 = smul.addr %s31, 16
          %s440 = scalar_lea.hbm %s4, %s439
          %s442 = sshll.u32 %s427, 4
          %s443 = int_to_ptr.vmem [resolvable:$true] %s442
          %445 = dma.vmem_to_hbm [thread:$0]  %s443, 16, %s440, %s425
        $region44: #{tpu_custom_call.1} parent=31 // pred_fallthru
          _
        // Predicated region
        $region45: #{tpu_custom_call.1} parent=31 // pred_check
          %p446 = pneg %p143
        $region46: #{tpu_custom_call.1} parent=31 // pred_check_branch
          %448 = sbr.rel (%p446) target = $region48
        $region47: #{tpu_custom_call.1} parent=31 // pred_region
          %s450 = ssub.s32 128, 128
          %451 = vsyncadd %s429, %s450
          %s452 = smul.addr %s31, 128
          %s453 = scalar_lea.hbm %s5, %s452
          %s455 = sshll.u32 %s432, 4
          %s456 = int_to_ptr.vmem [resolvable:$true] %s455
          %458 = dma.vmem_to_hbm [thread:$0]  %s456, 128, %s453, %s429
        $region48: #{tpu_custom_call.1} parent=31 // pred_fallthru
          _
      $region32: #{tpu_custom_call.1} parent=5 // pred_fallthru
        _
      %p459 = scmp.le.s32.totalorder 2, %s26
      // Predicated region
      $region49: #{tpu_custom_call.1} parent=5 // pred_check
        %p460 = pneg %p459
      $region50: #{tpu_custom_call.1} parent=5 // pred_check_branch
        %462 = sbr.rel (%p460) target = $region52
      $region51: #{tpu_custom_call.1} parent=5 // pred_region
        %s463 = ssub.s32 %s26, 2
        // Predicated region
        $region53: #{tpu_custom_call.1} parent=51 // pred_check
          %p464 = pneg %p123
        $region54: #{tpu_custom_call.1} parent=51 // pred_check_branch
          %466 = sbr.rel (%p464) target = $region56
        $region55: #{tpu_custom_call.1} parent=51 // pred_region
          %s467 = sand.u32 %s108, 1
          %s468 = scalar_lea.sflag [#allocation7], %s467
          %s469 = sand.u32 %s108, 1
          %s470 = scalar_lea.vmem [#allocation10], %s469
          %471 = dma.done %s468, 16
        $region56: #{tpu_custom_call.1} parent=51 // pred_fallthru
          _
        // Predicated region
        $region57: #{tpu_custom_call.1} parent=51 // pred_check
          %p472 = pneg %p149
        $region58: #{tpu_custom_call.1} parent=51 // pred_check_branch
          %474 = sbr.rel (%p472) target = $region60
        $region59: #{tpu_custom_call.1} parent=51 // pred_region
          %s475 = sand.u32 %s134, 1
          %s476 = scalar_lea.sflag [#allocation12], %s475
          %s477 = sand.u32 %s134, 1
          %s478 = smul.addr %s477, 8
          %s479 = scalar_lea.vmem [#allocation11], %s478
          %480 = dma.done %s476, 128
        $region60: #{tpu_custom_call.1} parent=51 // pred_fallthru
          _
      $region52: #{tpu_custom_call.1} parent=5 // pred_fallthru
        _
    $region6: #{tpu_custom_call.1} parent=1 // loop_footer
      %s30 = sadd.s32 1, %s26
    $region7: #{tpu_custom_call.1} parent=1 // loop_footer_branch
      %25 = sbr.rel target = $region3
    $region8: #{tpu_custom_call.1} parent=1 // loop_exit
      _
    %481 = vsyncpa [#allocation6], 1
    %s482 = scalar_lea.sflag [#allocation6], 1
    %483 = vsyncpa %s482, 1
    %484 = vsyncpa [#allocation9], 1
    %485 = vsyncpa [#allocation7], 1
    %s486 = scalar_lea.sflag [#allocation7], 1
    %487 = vsyncpa %s486, 1
    %488 = vsyncpa [#allocation12], 1
    %s489 = scalar_lea.sflag [#allocation12], 1
    %490 = vsyncpa %s489, 1

</llo_original>
